<compile_context>
chip_gen: v5e
topology: v5e:2x2
jax: 0.10.0
libtpu: 0.0.40
codegen_flags: <defaults>
</compile_context>

<pallas_src>
import functools

import jax
import jax.numpy as jnp
import numpy as np
from jax.experimental import pallas as pl
from jax.experimental.pallas import tpu as pltpu

SOS_token = 0
UNK_token = 1


def decoder_rnn_kernel(gi_ref,     # (2, Bb, 3H) f32  input-side GRU terms: row0=SOS step, row1=UNK steps
                       h0_ref,     # (Bb, H)     f32  i2h(decode_embed)
                       bhn_ref,    # (1, H)      f32  b_hh_n (stays inside the r*(...) term)
                       whh_ref,    # (H, 3H)          fused W_hh^T, gate order r|z|n
                       wout_ref,   # (H, Vp)          W_out[:, :H]^T, lane-padded to Vp
                       outde_ref,  # (Bb, Vp)    f32  de @ W_out[:, H:]^T + b_out (lane-padded)
                       out_ref,    # (n_steps*Bb, Vp) f32  logits, row = i*Bb + b
                       hs_ref):    # (n_steps*Bb, H)  f32  VMEM scratch of hidden states
    Bb, H = h0_ref.shape
    n_steps = hs_ref.shape[0] // Bb

    whh = whh_ref[...]
    bhn = bhn_ref[...]
    wd = whh.dtype
    gi_sos = gi_ref[0]                                   # (Bb, 3H)
    gi_unk = gi_ref[1]

    h = h0_ref[...]                                      # (Bb, H) f32 carried value

    # Static unroll: all indices are compile-time; only the fused (Bb,H)@(H,3H) matmul and
    # the gate nonlinearities sit on the serial h -> h dependency chain.
    for i in range(n_steps):
        gi = gi_sos if i == 0 else gi_unk
        gh = jnp.dot(h.astype(wd), whh, preferred_element_type=jnp.float32)   # (Bb, 3H)
        # sigmoid(x) = 0.5*tanh(0.5*x) + 0.5 : one EUP push covers both r and z gates.
        rz = 0.5 * jnp.tanh(0.5 * (gi[:, :2 * H] + gh[:, :2 * H])) + 0.5
        r = rz[:, :H]
        zg = rz[:, H:]
        n = jnp.tanh(gi[:, 2 * H:] + r * (gh[:, 2 * H:] + bhn))
        h = n + zg * (h - n)                             # == (1 - z)*n + z*h
        hs_ref[i * Bb:(i + 1) * Bb, :] = h

    # Batched output projection: one (n_steps*Bb, H)@(H, Vp) matmul + one dense,
    # lane-dense store (Vp is a multiple of 128).
    de_part = jnp.concatenate([outde_ref[...]] * n_steps, axis=0)             # (n_steps*Bb, Vp)
    out_ref[...] = (jnp.dot(hs_ref[...].astype(wout_ref.dtype), wout_ref[...],
                            preferred_element_type=jnp.float32) + de_part)


def prepare_decoder_weights(params, weight_dtype=jnp.float32):
    """One-time weight preprocessing (cache and reuse across forward calls).

    weight_dtype=jnp.bfloat16 halves matmul-operand bytes on v6e/v7x (accumulation stays
    f32); keep f32 on v5e, and note h is re-cast every step so bf16 error compounds —
    validate against the reference at the target n_steps before enabling it."""
    H = params["i2h_w"].shape[0]
    V = params["out_w"].shape[0]
    Vp = ((V + 127) // 128) * 128                        # lane-dense output width

    w_ih = params["gru_w_ih"]                            # (3H, H + I)
    b_ih = params["gru_b_ih"]
    b_hh = params["gru_b_hh"]
    w_out = params["out_w"]                              # (V, H + I)
    in_sz = w_out.shape[1] - H

    # word_dropout == 1.0 => token sequence is always [SOS, UNK, UNK, ...], so the
    # token-dependent part of gi = [relu(embed(tok)), de] @ W_ih^T + b_ih is a constant
    # pair of rows.  Fold b_ih everywhere and b_hh for r,z (b_hh_n stays in the r* term).
    e_tok = jnp.maximum(jnp.stack([params["embed"][SOS_token],
                                   params["embed"][UNK_token]], axis=0), 0.0)   # (2, H)
    bias = jnp.concatenate([b_ih[:2 * H] + b_hh[:2 * H], b_ih[2 * H:]])          # (3H,)
    gi_tok = e_tok @ w_ih[:, :H].T + bias[None, :]                               # (2, 3H)

    weights = {
        "gi_tok":    gi_tok,                                         # (2, 3H)  f32
        "w_ih_deT":  w_ih[:, H:].T,                                  # (I, 3H)  f32
        "bhn":       b_hh[2 * H:][None, :],                          # (1, H)   f32
        # Fused hidden-side GRU weight: gh = h @ whh -> (B, 3H), gate order r|z|n.
        "whh":       params["gru_w_hh"].T.astype(weight_dtype),      # (H, 3H)
        # Output projection split + lane padding: out = h @ wout + (de @ w_out_deT + b).
        "wout":      jnp.zeros((H, Vp), weight_dtype).at[:, :V].set(
                         w_out[:, :H].T.astype(weight_dtype)),       # (H, Vp)
        "w_out_deT": jnp.zeros((in_sz, Vp), jnp.float32).at[:, :V].set(w_out[:, H:].T),
        "out_b":     jnp.zeros((Vp,), jnp.float32).at[:V].set(params["out_b"]),
        "c2h_wT":    params["c2h_w"].T,
        "c2h_b":     params["c2h_b"],
        "i2h_wT":    params["i2h_w"].T,
        "i2h_b":     params["i2h_b"],
    }
    return weights, V


@functools.partial(jax.jit, static_argnames=("n_steps", "out_size", "batch_block"))
def decoder_rnn_forward(weights, z, condition, n_steps, out_size, batch_block=None):
    """Batched forward over independent (z, condition) rows.  Returns (n_steps, B, V).
    For large B on v7x, pass batch_block = B // 2 (a multiple of 8) so each TensorCore
    takes half the batch via the parallel grid axis."""
    B = z.shape[0]
    H = weights["whh"].shape[0]
    Vp = weights["wout"].shape[1]

    Bb = B if batch_block is None else batch_block
    assert B % Bb == 0, "batch must divide evenly into batch blocks"
    G = B // Bb
    if G > 1:
        # (8,128) block rule: non-full sublane block dims must be multiples of 8.
        assert Bb % 8 == 0 and (n_steps * Bb) % 8 == 0

    # Per-input preprocessing (batched, no per-step work; weight prep is cached).
    squashed = condition @ weights["c2h_wT"] + weights["c2h_b"][None, :]
    de = jnp.concatenate([z, squashed], axis=1)                          # (B, I)
    h0 = de @ weights["i2h_wT"] + weights["i2h_b"][None, :]              # (B, H)
    gi = weights["gi_tok"][:, None, :] + (de @ weights["w_ih_deT"])[None, :, :]   # (2, B, 3H)
    out_de = de @ weights["w_out_deT"] + weights["out_b"][None, :]       # (B, Vp)

    bhn, whh, wout = weights["bhn"], weights["whh"], weights["wout"]

    flops = 2 * B * n_steps * H * (3 * H) + 2 * B * n_steps * H * Vp
    transcendentals = B * n_steps * 3 * H
    bytes_accessed = int(sum(a.size * a.dtype.itemsize
                             for a in (gi, h0, bhn, whh, wout, out_de))
                         + B * n_steps * Vp * 4)

    out = pl.pallas_call(
        decoder_rnn_kernel,
        out_shape=jax.ShapeDtypeStruct((B * n_steps, Vp), jnp.float32),
        grid_spec=pltpu.PrefetchScalarGridSpec(
            num_scalar_prefetch=0,
            grid=(G,),
            in_specs=[
                pl.BlockSpec((2, Bb, 3 * H), lambda g: (0, g, 0)),   # gi
                pl.BlockSpec((Bb, H), lambda g: (g, 0)),             # h0
                pl.BlockSpec((1, H), lambda g: (0, 0)),              # b_hh_n
                pl.BlockSpec((H, 3 * H), lambda g: (0, 0)),          # fused W_hh^T
                pl.BlockSpec((H, Vp), lambda g: (0, 0)),             # W_out_h^T (padded)
                pl.BlockSpec((Bb, Vp), lambda g: (g, 0)),            # out_de (padded)
            ],
            out_specs=pl.BlockSpec((n_steps * Bb, Vp), lambda g: (g, 0)),
            scratch_shapes=[pltpu.VMEM((n_steps * Bb, H), jnp.float32)],
        ),
        compiler_params=pltpu.CompilerParams(
            dimension_semantics=("parallel",)),       # batch blocks independent -> v7x dual-TC
        cost_estimate=pl.CostEstimate(flops=flops,
                                      transcendentals=transcendentals,
                                      bytes_accessed=bytes_accessed),
    )(gi, h0, bhn, whh, wout, out_de)

    # Kernel row order inside a batch block is (step, batch).  Reassemble (n_steps, B, V).
    out = out.reshape(G, n_steps, Bb, Vp)
    out = jnp.moveaxis(out, 1, 0).reshape(n_steps, B, Vp)
    return out[:, :, :out_size]


def reference_forward(params, z, condition, n_steps):
    """Pure-JAX reference mirroring the PyTorch forward (word_dropout=1.0), batched over
    independent (z, condition) rows.  Returns (n_steps, B, output_size)."""
    H = params["i2h_w"].shape[0]
    B = z.shape[0]
    squashed = condition @ params["c2h_w"].T + params["c2h_b"][None, :]
    de = jnp.concatenate([z, squashed], axis=1)
    h = de @ params["i2h_w"].T + params["i2h_b"][None, :]
    toks = [SOS_token] + [UNK_token] * (n_steps - 1)
    outs = []
    for tok in toks:
        e = jnp.broadcast_to(jnp.maximum(params["embed"][tok][None, :], 0.0), (B, H))
        x = jnp.concatenate([e, de], axis=1)
        gi = x @ params["gru_w_ih"].T + params["gru_b_ih"][None, :]
        gh = h @ params["gru_w_hh"].T + params["gru_b_hh"][None, :]
        r = jax.nn.sigmoid(gi[:, :H] + gh[:, :H])
        zg = jax.nn.sigmoid(gi[:, H:2 * H] + gh[:, H:2 * H])
        n = jnp.tanh(gi[:, 2 * H:] + r * gh[:, 2 * H:])
        h = (1.0 - zg) * n + zg * h
        o = jnp.concatenate([h, de], axis=1)
        outs.append(o @ params["out_w"].T + params["out_b"][None, :])
    return jnp.stack(outs, axis=0)


def init_params(key, z_size, n_conditions, condition_size, hidden_size, output_size):
    input_size = z_size + condition_size
    ks = jax.random.split(key, 12)
    s = 0.1
    params = {
        # nn.Embedding(output_size, hidden_size)
        "embed":    jax.random.normal(ks[0], (output_size, hidden_size), jnp.float32) * s,
        # nn.Linear(n_conditions, condition_size)
        "c2h_w":    jax.random.normal(ks[1], (condition_size, n_conditions), jnp.float32) * s,
        "c2h_b":    jax.random.normal(ks[2], (condition_size,), jnp.float32) * s,
        # nn.Linear(input_size, hidden_size)
        "i2h_w":    jax.random.normal(ks[3], (hidden_size, input_size), jnp.float32) * s,
        "i2h_b":    jax.random.normal(ks[4], (hidden_size,), jnp.float32) * s,
        # nn.GRU(hidden_size + input_size, hidden_size, 1)   gate order: r, z, n
        "gru_w_ih": jax.random.normal(ks[5], (3 * hidden_size, hidden_size + input_size), jnp.float32) * s,
        "gru_w_hh": jax.random.normal(ks[6], (3 * hidden_size, hidden_size), jnp.float32) * s,
        "gru_b_ih": jax.random.normal(ks[7], (3 * hidden_size,), jnp.float32) * s,
        "gru_b_hh": jax.random.normal(ks[8], (3 * hidden_size,), jnp.float32) * s,
        # nn.Linear(hidden_size + input_size, output_size)
        "out_w":    jax.random.normal(ks[9], (output_size, hidden_size + input_size), jnp.float32) * s,
        "out_b":    jax.random.normal(ks[10], (output_size,), jnp.float32) * s,
    }
    return params


if __name__ == "__main__":
    batch = 2
    z_size, n_conditions, condition_size = 16, 8, 4
    hidden_size, output_size = 32, 32
    n_steps = 8

    key = jax.random.PRNGKey(0)
    pkey, zkey, ckey = jax.random.split(key, 3)
    params = init_params(pkey, z_size, n_conditions, condition_size, hidden_size, output_size)

    z = jax.random.normal(zkey, (batch, z_size), jnp.float32)
    condition = jax.random.normal(ckey, (batch, n_conditions), jnp.float32)

    # Weight preprocessing cached once per parameter set.  f32 weights here so the tight
    # tolerance check passes; pass weight_dtype=jnp.bfloat16 on v6e/v7x to halve
    # matmul-operand bytes (f32 accumulation / gate math is kept either way).
    weights, vocab = prepare_decoder_weights(params, weight_dtype=jnp.float32)

    out = decoder_rnn_forward(weights, z, condition, n_steps=n_steps, out_size=vocab)
    out = jax.block_until_ready(out)

    ref = reference_forward(params, z, condition, n_steps)
    assert out.shape == (n_steps, batch, output_size)
    np.testing.assert_allclose(np.asarray(out), np.asarray(ref), rtol=1e-4, atol=1e-4)

    print("KERNEL_OK")
</pallas_src>

<mosaic_0001>
module attributes {stable_mosaic.version = 11 : i64} {
  func.func @decoder_rnn_kernel(%arg0: i32, %arg1: memref<2x2x96xf32, #tpu.memory_space<vmem>>, %arg2: memref<2x32xf32, #tpu.memory_space<vmem>>, %arg3: memref<1x32xf32, #tpu.memory_space<vmem>>, %arg4: memref<32x96xf32, #tpu.memory_space<vmem>>, %arg5: memref<32x128xf32, #tpu.memory_space<vmem>>, %arg6: memref<2x128xf32, #tpu.memory_space<vmem>>, %arg7: memref<16x128xf32, #tpu.memory_space<vmem>>, %arg8: memref<16x32xf32, #tpu.memory_space<vmem>>) attributes {dimension_semantics = [#tpu.dimension_semantics<parallel>], iteration_bounds = array<i64: 1>, scalar_prefetch = 0 : i64, scratch_operands = 1 : i64, tpu.core_type = #tpu.core_type<tc>, window_params = [{transform_indices = @transform_0, window_bounds = array<i64: 2, 2, 96>}, {transform_indices = @transform_1, window_bounds = array<i64: 2, 32>}, {pipeline_mode = #tpu.pipeline_mode<synchronous>, transform_indices = @transform_2, window_bounds = array<i64: 1, 32>}, {pipeline_mode = #tpu.pipeline_mode<synchronous>, transform_indices = @transform_3, window_bounds = array<i64: 32, 96>}, {pipeline_mode = #tpu.pipeline_mode<synchronous>, transform_indices = @transform_4, window_bounds = array<i64: 32, 128>}, {transform_indices = @transform_5, window_bounds = array<i64: 2, 128>}, {transform_indices = @transform_6, window_bounds = array<i64: 16, 128>}]} {
    %c0 = arith.constant 0 : index
    %c0_0 = arith.constant 0 : index
    %0 = vector.load %arg4[%c0, %c0_0] : memref<32x96xf32, #tpu.memory_space<vmem>>, vector<32x96xf32>
    %c0_1 = arith.constant 0 : index
    %c0_2 = arith.constant 0 : index
    %1 = vector.load %arg3[%c0_1, %c0_2] : memref<1x32xf32, #tpu.memory_space<vmem>>, vector<1x32xf32>
    %c0_3 = arith.constant 0 : index
    %c0_4 = arith.constant 0 : index
    %c0_5 = arith.constant 0 : index
    %2 = vector.load %arg1[%c0_3, %c0_4, %c0_5] : memref<2x2x96xf32, #tpu.memory_space<vmem>>, vector<1x2x96xf32>
    %3 = vector.shape_cast %2 : vector<1x2x96xf32> to vector<2x96xf32>
    %c1 = arith.constant 1 : index
    %c0_6 = arith.constant 0 : index
    %c0_7 = arith.constant 0 : index
    %4 = vector.load %arg1[%c1, %c0_6, %c0_7] : memref<2x2x96xf32, #tpu.memory_space<vmem>>, vector<1x2x96xf32>
    %5 = vector.shape_cast %4 : vector<1x2x96xf32> to vector<2x96xf32>
    %c0_8 = arith.constant 0 : index
    %c0_9 = arith.constant 0 : index
    %6 = vector.load %arg2[%c0_8, %c0_9] : memref<2x32xf32, #tpu.memory_space<vmem>>, vector<2x32xf32>
    %cst = arith.constant dense<0.000000e+00> : vector<2x96xf32>
    %7 = tpu.matmul %6, %0, %cst {dimension_numbers = #tpu.dot_dimension_numbers<[1], [0], [0], [1], [0, 0, 1, 1], [], []>} : vector<2x32xf32>, vector<32x96xf32>, vector<2x96xf32> -> vector<2x96xf32>
    %8 = vector.extract_strided_slice %3 {offsets = [0, 0], sizes = [2, 64], strides = [1, 1]} : vector<2x96xf32> to vector<2x64xf32>
    %9 = vector.extract_strided_slice %7 {offsets = [0, 0], sizes = [2, 64], strides = [1, 1]} : vector<2x96xf32> to vector<2x64xf32>
    %10 = arith.addf %8, %9 : vector<2x64xf32>
    %cst_10 = arith.constant 5.000000e-01 : f32
    %11 = vector.broadcast %cst_10 : f32 to vector<2x64xf32>
    %12 = arith.mulf %11, %10 : vector<2x64xf32>
    %13 = math.tanh %12 : vector<2x64xf32>
    %cst_11 = arith.constant 5.000000e-01 : f32
    %14 = vector.broadcast %cst_11 : f32 to vector<2x64xf32>
    %15 = arith.mulf %14, %13 : vector<2x64xf32>
    %cst_12 = arith.constant 5.000000e-01 : f32
    %16 = vector.broadcast %cst_12 : f32 to vector<2x64xf32>
    %17 = arith.addf %15, %16 : vector<2x64xf32>
    %18 = vector.extract_strided_slice %17 {offsets = [0, 0], sizes = [2, 32], strides = [1, 1]} : vector<2x64xf32> to vector<2x32xf32>
    %19 = vector.extract_strided_slice %17 {offsets = [0, 32], sizes = [2, 32], strides = [1, 1]} : vector<2x64xf32> to vector<2x32xf32>
    %20 = vector.extract_strided_slice %3 {offsets = [0, 64], sizes = [2, 32], strides = [1, 1]} : vector<2x96xf32> to vector<2x32xf32>
    %21 = vector.extract_strided_slice %7 {offsets = [0, 64], sizes = [2, 32], strides = [1, 1]} : vector<2x96xf32> to vector<2x32xf32>
    %22 = vector.broadcast %1 : vector<1x32xf32> to vector<2x32xf32>
    %23 = arith.addf %21, %22 : vector<2x32xf32>
    %24 = arith.mulf %18, %23 : vector<2x32xf32>
    %25 = arith.addf %20, %24 : vector<2x32xf32>
    %26 = math.tanh %25 : vector<2x32xf32>
    %27 = arith.subf %6, %26 : vector<2x32xf32>
    %28 = arith.mulf %19, %27 : vector<2x32xf32>
    %29 = arith.addf %26, %28 : vector<2x32xf32>
    %c0_13 = arith.constant 0 : index
    %c0_14 = arith.constant 0 : index
    %30 = vector.load %arg8[%c0_13, %c0_14] : memref<16x32xf32, #tpu.memory_space<vmem>>, vector<2x32xf32>
    tpu.vector_store %arg8[%c0_13, %c0_14], %29 {strides = array<i32>} : memref<16x32xf32, #tpu.memory_space<vmem>>, vector<2x32xf32>,
    %cst_15 = arith.constant dense<0.000000e+00> : vector<2x96xf32>
    %31 = tpu.matmul %29, %0, %cst_15 {dimension_numbers = #tpu.dot_dimension_numbers<[1], [0], [0], [1], [0, 0, 1, 1], [], []>} : vector<2x32xf32>, vector<32x96xf32>, vector<2x96xf32> -> vector<2x96xf32>
    %32 = vector.extract_strided_slice %5 {offsets = [0, 0], sizes = [2, 64], strides = [1, 1]} : vector<2x96xf32> to vector<2x64xf32>
    %33 = vector.extract_strided_slice %31 {offsets = [0, 0], sizes = [2, 64], strides = [1, 1]} : vector<2x96xf32> to vector<2x64xf32>
    %34 = arith.addf %32, %33 : vector<2x64xf32>
    %cst_16 = arith.constant 5.000000e-01 : f32
    %35 = vector.broadcast %cst_16 : f32 to vector<2x64xf32>
    %36 = arith.mulf %35, %34 : vector<2x64xf32>
    %37 = math.tanh %36 : vector<2x64xf32>
    %cst_17 = arith.constant 5.000000e-01 : f32
    %38 = vector.broadcast %cst_17 : f32 to vector<2x64xf32>
    %39 = arith.mulf %38, %37 : vector<2x64xf32>
    %cst_18 = arith.constant 5.000000e-01 : f32
    %40 = vector.broadcast %cst_18 : f32 to vector<2x64xf32>
    %41 = arith.addf %39, %40 : vector<2x64xf32>
    %42 = vector.extract_strided_slice %41 {offsets = [0, 0], sizes = [2, 32], strides = [1, 1]} : vector<2x64xf32> to vector<2x32xf32>
    %43 = vector.extract_strided_slice %41 {offsets = [0, 32], sizes = [2, 32], strides = [1, 1]} : vector<2x64xf32> to vector<2x32xf32>
    %44 = vector.extract_strided_slice %5 {offsets = [0, 64], sizes = [2, 32], strides = [1, 1]} : vector<2x96xf32> to vector<2x32xf32>
    %45 = vector.extract_strided_slice %31 {offsets = [0, 64], sizes = [2, 32], strides = [1, 1]} : vector<2x96xf32> to vector<2x32xf32>
    %46 = vector.broadcast %1 : vector<1x32xf32> to vector<2x32xf32>
    %47 = arith.addf %45, %46 : vector<2x32xf32>
    %48 = arith.mulf %42, %47 : vector<2x32xf32>
    %49 = arith.addf %44, %48 : vector<2x32xf32>
    %50 = math.tanh %49 : vector<2x32xf32>
    %51 = arith.subf %29, %50 : vector<2x32xf32>
    %52 = arith.mulf %43, %51 : vector<2x32xf32>
    %53 = arith.addf %50, %52 : vector<2x32xf32>
    %c2 = arith.constant 2 : index
    %c0_19 = arith.constant 0 : index
    %54 = vector.load %arg8[%c2, %c0_19] : memref<16x32xf32, #tpu.memory_space<vmem>>, vector<2x32xf32>
    tpu.vector_store %arg8[%c2, %c0_19], %53 {strides = array<i32>} : memref<16x32xf32, #tpu.memory_space<vmem>>, vector<2x32xf32>,
    %cst_20 = arith.constant dense<0.000000e+00> : vector<2x96xf32>
    %55 = tpu.matmul %53, %0, %cst_20 {dimension_numbers = #tpu.dot_dimension_numbers<[1], [0], [0], [1], [0, 0, 1, 1], [], []>} : vector<2x32xf32>, vector<32x96xf32>, vector<2x96xf32> -> vector<2x96xf32>
    %56 = vector.extract_strided_slice %5 {offsets = [0, 0], sizes = [2, 64], strides = [1, 1]} : vector<2x96xf32> to vector<2x64xf32>
    %57 = vector.extract_strided_slice %55 {offsets = [0, 0], sizes = [2, 64], strides = [1, 1]} : vector<2x96xf32> to vector<2x64xf32>
    %58 = arith.addf %56, %57 : vector<2x64xf32>
    %cst_21 = arith.constant 5.000000e-01 : f32
    %59 = vector.broadcast %cst_21 : f32 to vector<2x64xf32>
    %60 = arith.mulf %59, %58 : vector<2x64xf32>
    %61 = math.tanh %60 : vector<2x64xf32>
    %cst_22 = arith.constant 5.000000e-01 : f32
    %62 = vector.broadcast %cst_22 : f32 to vector<2x64xf32>
    %63 = arith.mulf %62, %61 : vector<2x64xf32>
    %cst_23 = arith.constant 5.000000e-01 : f32
    %64 = vector.broadcast %cst_23 : f32 to vector<2x64xf32>
    %65 = arith.addf %63, %64 : vector<2x64xf32>
    %66 = vector.extract_strided_slice %65 {offsets = [0, 0], sizes = [2, 32], strides = [1, 1]} : vector<2x64xf32> to vector<2x32xf32>
    %67 = vector.extract_strided_slice %65 {offsets = [0, 32], sizes = [2, 32], strides = [1, 1]} : vector<2x64xf32> to vector<2x32xf32>
    %68 = vector.extract_strided_slice %5 {offsets = [0, 64], sizes = [2, 32], strides = [1, 1]} : vector<2x96xf32> to vector<2x32xf32>
    %69 = vector.extract_strided_slice %55 {offsets = [0, 64], sizes = [2, 32], strides = [1, 1]} : vector<2x96xf32> to vector<2x32xf32>
    %70 = vector.broadcast %1 : vector<1x32xf32> to vector<2x32xf32>
    %71 = arith.addf %69, %70 : vector<2x32xf32>
    %72 = arith.mulf %66, %71 : vector<2x32xf32>
    %73 = arith.addf %68, %72 : vector<2x32xf32>
    %74 = math.tanh %73 : vector<2x32xf32>
    %75 = arith.subf %53, %74 : vector<2x32xf32>
    %76 = arith.mulf %67, %75 : vector<2x32xf32>
    %77 = arith.addf %74, %76 : vector<2x32xf32>
    %c4 = arith.constant 4 : index
    %c0_24 = arith.constant 0 : index
    %78 = vector.load %arg8[%c4, %c0_24] : memref<16x32xf32, #tpu.memory_space<vmem>>, vector<2x32xf32>
    tpu.vector_store %arg8[%c4, %c0_24], %77 {strides = array<i32>} : memref<16x32xf32, #tpu.memory_space<vmem>>, vector<2x32xf32>,
    %cst_25 = arith.constant dense<0.000000e+00> : vector<2x96xf32>
    %79 = tpu.matmul %77, %0, %cst_25 {dimension_numbers = #tpu.dot_dimension_numbers<[1], [0], [0], [1], [0, 0, 1, 1], [], []>} : vector<2x32xf32>, vector<32x96xf32>, vector<2x96xf32> -> vector<2x96xf32>
    %80 = vector.extract_strided_slice %5 {offsets = [0, 0], sizes = [2, 64], strides = [1, 1]} : vector<2x96xf32> to vector<2x64xf32>
    %81 = vector.extract_strided_slice %79 {offsets = [0, 0], sizes = [2, 64], strides = [1, 1]} : vector<2x96xf32> to vector<2x64xf32>
    %82 = arith.addf %80, %81 : vector<2x64xf32>
    %cst_26 = arith.constant 5.000000e-01 : f32
    %83 = vector.broadcast %cst_26 : f32 to vector<2x64xf32>
    %84 = arith.mulf %83, %82 : vector<2x64xf32>
    %85 = math.tanh %84 : vector<2x64xf32>
    %cst_27 = arith.constant 5.000000e-01 : f32
    %86 = vector.broadcast %cst_27 : f32 to vector<2x64xf32>
    %87 = arith.mulf %86, %85 : vector<2x64xf32>
    %cst_28 = arith.constant 5.000000e-01 : f32
    %88 = vector.broadcast %cst_28 : f32 to vector<2x64xf32>
    %89 = arith.addf %87, %88 : vector<2x64xf32>
    %90 = vector.extract_strided_slice %89 {offsets = [0, 0], sizes = [2, 32], strides = [1, 1]} : vector<2x64xf32> to vector<2x32xf32>
    %91 = vector.extract_strided_slice %89 {offsets = [0, 32], sizes = [2, 32], strides = [1, 1]} : vector<2x64xf32> to vector<2x32xf32>
    %92 = vector.extract_strided_slice %5 {offsets = [0, 64], sizes = [2, 32], strides = [1, 1]} : vector<2x96xf32> to vector<2x32xf32>
    %93 = vector.extract_strided_slice %79 {offsets = [0, 64], sizes = [2, 32], strides = [1, 1]} : vector<2x96xf32> to vector<2x32xf32>
    %94 = vector.broadcast %1 : vector<1x32xf32> to vector<2x32xf32>
    %95 = arith.addf %93, %94 : vector<2x32xf32>
    %96 = arith.mulf %90, %95 : vector<2x32xf32>
    %97 = arith.addf %92, %96 : vector<2x32xf32>
    %98 = math.tanh %97 : vector<2x32xf32>
    %99 = arith.subf %77, %98 : vector<2x32xf32>
    %100 = arith.mulf %91, %99 : vector<2x32xf32>
    %101 = arith.addf %98, %100 : vector<2x32xf32>
    %c6 = arith.constant 6 : index
    %c0_29 = arith.constant 0 : index
    %102 = vector.load %arg8[%c6, %c0_29] : memref<16x32xf32, #tpu.memory_space<vmem>>, vector<2x32xf32>
    tpu.vector_store %arg8[%c6, %c0_29], %101 {strides = array<i32>} : memref<16x32xf32, #tpu.memory_space<vmem>>, vector<2x32xf32>,
    %cst_30 = arith.constant dense<0.000000e+00> : vector<2x96xf32>
    %103 = tpu.matmul %101, %0, %cst_30 {dimension_numbers = #tpu.dot_dimension_numbers<[1], [0], [0], [1], [0, 0, 1, 1], [], []>} : vector<2x32xf32>, vector<32x96xf32>, vector<2x96xf32> -> vector<2x96xf32>
    %104 = vector.extract_strided_slice %5 {offsets = [0, 0], sizes = [2, 64], strides = [1, 1]} : vector<2x96xf32> to vector<2x64xf32>
    %105 = vector.extract_strided_slice %103 {offsets = [0, 0], sizes = [2, 64], strides = [1, 1]} : vector<2x96xf32> to vector<2x64xf32>
    %106 = arith.addf %104, %105 : vector<2x64xf32>
    %cst_31 = arith.constant 5.000000e-01 : f32
    %107 = vector.broadcast %cst_31 : f32 to vector<2x64xf32>
    %108 = arith.mulf %107, %106 : vector<2x64xf32>
    %109 = math.tanh %108 : vector<2x64xf32>
    %cst_32 = arith.constant 5.000000e-01 : f32
    %110 = vector.broadcast %cst_32 : f32 to vector<2x64xf32>
    %111 = arith.mulf %110, %109 : vector<2x64xf32>
    %cst_33 = arith.constant 5.000000e-01 : f32
    %112 = vector.broadcast %cst_33 : f32 to vector<2x64xf32>
    %113 = arith.addf %111, %112 : vector<2x64xf32>
    %114 = vector.extract_strided_slice %113 {offsets = [0, 0], sizes = [2, 32], strides = [1, 1]} : vector<2x64xf32> to vector<2x32xf32>
    %115 = vector.extract_strided_slice %113 {offsets = [0, 32], sizes = [2, 32], strides = [1, 1]} : vector<2x64xf32> to vector<2x32xf32>
    %116 = vector.extract_strided_slice %5 {offsets = [0, 64], sizes = [2, 32], strides = [1, 1]} : vector<2x96xf32> to vector<2x32xf32>
    %117 = vector.extract_strided_slice %103 {offsets = [0, 64], sizes = [2, 32], strides = [1, 1]} : vector<2x96xf32> to vector<2x32xf32>
    %118 = vector.broadcast %1 : vector<1x32xf32> to vector<2x32xf32>
    %119 = arith.addf %117, %118 : vector<2x32xf32>
    %120 = arith.mulf %114, %119 : vector<2x32xf32>
    %121 = arith.addf %116, %120 : vector<2x32xf32>
    %122 = math.tanh %121 : vector<2x32xf32>
    %123 = arith.subf %101, %122 : vector<2x32xf32>
    %124 = arith.mulf %115, %123 : vector<2x32xf32>
    %125 = arith.addf %122, %124 : vector<2x32xf32>
    %c8 = arith.constant 8 : index
    %c0_34 = arith.constant 0 : index
    %126 = vector.load %arg8[%c8, %c0_34] : memref<16x32xf32, #tpu.memory_space<vmem>>, vector<2x32xf32>
    tpu.vector_store %arg8[%c8, %c0_34], %125 {strides = array<i32>} : memref<16x32xf32, #tpu.memory_space<vmem>>, vector<2x32xf32>,
    %cst_35 = arith.constant dense<0.000000e+00> : vector<2x96xf32>
    %127 = tpu.matmul %125, %0, %cst_35 {dimension_numbers = #tpu.dot_dimension_numbers<[1], [0], [0], [1], [0, 0, 1, 1], [], []>} : vector<2x32xf32>, vector<32x96xf32>, vector<2x96xf32> -> vector<2x96xf32>
    %128 = vector.extract_strided_slice %5 {offsets = [0, 0], sizes = [2, 64], strides = [1, 1]} : vector<2x96xf32> to vector<2x64xf32>
    %129 = vector.extract_strided_slice %127 {offsets = [0, 0], sizes = [2, 64], strides = [1, 1]} : vector<2x96xf32> to vector<2x64xf32>
    %130 = arith.addf %128, %129 : vector<2x64xf32>
    %cst_36 = arith.constant 5.000000e-01 : f32
    %131 = vector.broadcast %cst_36 : f32 to vector<2x64xf32>
    %132 = arith.mulf %131, %130 : vector<2x64xf32>
    %133 = math.tanh %132 : vector<2x64xf32>
    %cst_37 = arith.constant 5.000000e-01 : f32
    %134 = vector.broadcast %cst_37 : f32 to vector<2x64xf32>
    %135 = arith.mulf %134, %133 : vector<2x64xf32>
    %cst_38 = arith.constant 5.000000e-01 : f32
    %136 = vector.broadcast %cst_38 : f32 to vector<2x64xf32>
    %137 = arith.addf %135, %136 : vector<2x64xf32>
    %138 = vector.extract_strided_slice %137 {offsets = [0, 0], sizes = [2, 32], strides = [1, 1]} : vector<2x64xf32> to vector<2x32xf32>
    %139 = vector.extract_strided_slice %137 {offsets = [0, 32], sizes = [2, 32], strides = [1, 1]} : vector<2x64xf32> to vector<2x32xf32>
    %140 = vector.extract_strided_slice %5 {offsets = [0, 64], sizes = [2, 32], strides = [1, 1]} : vector<2x96xf32> to vector<2x32xf32>
    %141 = vector.extract_strided_slice %127 {offsets = [0, 64], sizes = [2, 32], strides = [1, 1]} : vector<2x96xf32> to vector<2x32xf32>
    %142 = vector.broadcast %1 : vector<1x32xf32> to vector<2x32xf32>
    %143 = arith.addf %141, %142 : vector<2x32xf32>
    %144 = arith.mulf %138, %143 : vector<2x32xf32>
    %145 = arith.addf %140, %144 : vector<2x32xf32>
    %146 = math.tanh %145 : vector<2x32xf32>
    %147 = arith.subf %125, %146 : vector<2x32xf32>
    %148 = arith.mulf %139, %147 : vector<2x32xf32>
    %149 = arith.addf %146, %148 : vector<2x32xf32>
    %c10 = arith.constant 10 : index
    %c0_39 = arith.constant 0 : index
    %150 = vector.load %arg8[%c10, %c0_39] : memref<16x32xf32, #tpu.memory_space<vmem>>, vector<2x32xf32>
    tpu.vector_store %arg8[%c10, %c0_39], %149 {strides = array<i32>} : memref<16x32xf32, #tpu.memory_space<vmem>>, vector<2x32xf32>,
    %cst_40 = arith.constant dense<0.000000e+00> : vector<2x96xf32>
    %151 = tpu.matmul %149, %0, %cst_40 {dimension_numbers = #tpu.dot_dimension_numbers<[1], [0], [0], [1], [0, 0, 1, 1], [], []>} : vector<2x32xf32>, vector<32x96xf32>, vector<2x96xf32> -> vector<2x96xf32>
    %152 = vector.extract_strided_slice %5 {offsets = [0, 0], sizes = [2, 64], strides = [1, 1]} : vector<2x96xf32> to vector<2x64xf32>
    %153 = vector.extract_strided_slice %151 {offsets = [0, 0], sizes = [2, 64], strides = [1, 1]} : vector<2x96xf32> to vector<2x64xf32>
    %154 = arith.addf %152, %153 : vector<2x64xf32>
    %cst_41 = arith.constant 5.000000e-01 : f32
    %155 = vector.broadcast %cst_41 : f32 to vector<2x64xf32>
    %156 = arith.mulf %155, %154 : vector<2x64xf32>
    %157 = math.tanh %156 : vector<2x64xf32>
    %cst_42 = arith.constant 5.000000e-01 : f32
    %158 = vector.broadcast %cst_42 : f32 to vector<2x64xf32>
    %159 = arith.mulf %158, %157 : vector<2x64xf32>
    %cst_43 = arith.constant 5.000000e-01 : f32
    %160 = vector.broadcast %cst_43 : f32 to vector<2x64xf32>
    %161 = arith.addf %159, %160 : vector<2x64xf32>
    %162 = vector.extract_strided_slice %161 {offsets = [0, 0], sizes = [2, 32], strides = [1, 1]} : vector<2x64xf32> to vector<2x32xf32>
    %163 = vector.extract_strided_slice %161 {offsets = [0, 32], sizes = [2, 32], strides = [1, 1]} : vector<2x64xf32> to vector<2x32xf32>
    %164 = vector.extract_strided_slice %5 {offsets = [0, 64], sizes = [2, 32], strides = [1, 1]} : vector<2x96xf32> to vector<2x32xf32>
    %165 = vector.extract_strided_slice %151 {offsets = [0, 64], sizes = [2, 32], strides = [1, 1]} : vector<2x96xf32> to vector<2x32xf32>
    %166 = vector.broadcast %1 : vector<1x32xf32> to vector<2x32xf32>
    %167 = arith.addf %165, %166 : vector<2x32xf32>
    %168 = arith.mulf %162, %167 : vector<2x32xf32>
    %169 = arith.addf %164, %168 : vector<2x32xf32>
    %170 = math.tanh %169 : vector<2x32xf32>
    %171 = arith.subf %149, %170 : vector<2x32xf32>
    %172 = arith.mulf %163, %171 : vector<2x32xf32>
    %173 = arith.addf %170, %172 : vector<2x32xf32>
    %c12 = arith.constant 12 : index
    %c0_44 = arith.constant 0 : index
    %174 = vector.load %arg8[%c12, %c0_44] : memref<16x32xf32, #tpu.memory_space<vmem>>, vector<2x32xf32>
    tpu.vector_store %arg8[%c12, %c0_44], %173 {strides = array<i32>} : memref<16x32xf32, #tpu.memory_space<vmem>>, vector<2x32xf32>,
    %cst_45 = arith.constant dense<0.000000e+00> : vector<2x96xf32>
    %175 = tpu.matmul %173, %0, %cst_45 {dimension_numbers = #tpu.dot_dimension_numbers<[1], [0], [0], [1], [0, 0, 1, 1], [], []>} : vector<2x32xf32>, vector<32x96xf32>, vector<2x96xf32> -> vector<2x96xf32>
    %176 = vector.extract_strided_slice %5 {offsets = [0, 0], sizes = [2, 64], strides = [1, 1]} : vector<2x96xf32> to vector<2x64xf32>
    %177 = vector.extract_strided_slice %175 {offsets = [0, 0], sizes = [2, 64], strides = [1, 1]} : vector<2x96xf32> to vector<2x64xf32>
    %178 = arith.addf %176, %177 : vector<2x64xf32>
    %cst_46 = arith.constant 5.000000e-01 : f32
    %179 = vector.broadcast %cst_46 : f32 to vector<2x64xf32>
    %180 = arith.mulf %179, %178 : vector<2x64xf32>
    %181 = math.tanh %180 : vector<2x64xf32>
    %cst_47 = arith.constant 5.000000e-01 : f32
    %182 = vector.broadcast %cst_47 : f32 to vector<2x64xf32>
    %183 = arith.mulf %182, %181 : vector<2x64xf32>
    %cst_48 = arith.constant 5.000000e-01 : f32
    %184 = vector.broadcast %cst_48 : f32 to vector<2x64xf32>
    %185 = arith.addf %183, %184 : vector<2x64xf32>
    %186 = vector.extract_strided_slice %185 {offsets = [0, 0], sizes = [2, 32], strides = [1, 1]} : vector<2x64xf32> to vector<2x32xf32>
    %187 = vector.extract_strided_slice %185 {offsets = [0, 32], sizes = [2, 32], strides = [1, 1]} : vector<2x64xf32> to vector<2x32xf32>
    %188 = vector.extract_strided_slice %5 {offsets = [0, 64], sizes = [2, 32], strides = [1, 1]} : vector<2x96xf32> to vector<2x32xf32>
    %189 = vector.extract_strided_slice %175 {offsets = [0, 64], sizes = [2, 32], strides = [1, 1]} : vector<2x96xf32> to vector<2x32xf32>
    %190 = vector.broadcast %1 : vector<1x32xf32> to vector<2x32xf32>
    %191 = arith.addf %189, %190 : vector<2x32xf32>
    %192 = arith.mulf %186, %191 : vector<2x32xf32>
    %193 = arith.addf %188, %192 : vector<2x32xf32>
    %194 = math.tanh %193 : vector<2x32xf32>
    %195 = arith.subf %173, %194 : vector<2x32xf32>
    %196 = arith.mulf %187, %195 : vector<2x32xf32>
    %197 = arith.addf %194, %196 : vector<2x32xf32>
    %c14 = arith.constant 14 : index
    %c0_49 = arith.constant 0 : index
    %198 = vector.load %arg8[%c14, %c0_49] : memref<16x32xf32, #tpu.memory_space<vmem>>, vector<2x32xf32>
    tpu.vector_store %arg8[%c14, %c0_49], %197 {strides = array<i32>} : memref<16x32xf32, #tpu.memory_space<vmem>>, vector<2x32xf32>,
    %c0_50 = arith.constant 0 : index
    %c0_51 = arith.constant 0 : index
    %199 = vector.load %arg6[%c0_50, %c0_51] : memref<2x128xf32, #tpu.memory_space<vmem>>, vector<2x128xf32>
    %200 = tpu.concatenate %199, %199, %199, %199, %199, %199, %199, %199 in 0 : vector<2x128xf32>, vector<2x128xf32>, vector<2x128xf32>, vector<2x128xf32>, vector<2x128xf32>, vector<2x128xf32>, vector<2x128xf32>, vector<2x128xf32> -> vector<16x128xf32>
    %c0_52 = arith.constant 0 : index
    %c0_53 = arith.constant 0 : index
    %201 = vector.load %arg8[%c0_52, %c0_53] : memref<16x32xf32, #tpu.memory_space<vmem>>, vector<16x32xf32>
    %c0_54 = arith.constant 0 : index
    %c0_55 = arith.constant 0 : index
    %202 = vector.load %arg5[%c0_54, %c0_55] : memref<32x128xf32, #tpu.memory_space<vmem>>, vector<32x128xf32>
    %cst_56 = arith.constant dense<0.000000e+00> : vector<16x128xf32>
    %203 = tpu.matmul %201, %202, %cst_56 {dimension_numbers = #tpu.dot_dimension_numbers<[1], [0], [0], [1], [0, 0, 1, 1], [], []>} : vector<16x32xf32>, vector<32x128xf32>, vector<16x128xf32> -> vector<16x128xf32>
    %204 = arith.addf %203, %200 : vector<16x128xf32>
    %c0_57 = arith.constant 0 : index
    %c0_58 = arith.constant 0 : index
    %205 = vector.load %arg7[%c0_57, %c0_58] : memref<16x128xf32, #tpu.memory_space<vmem>>, vector<16x128xf32>
    tpu.vector_store %arg7[%c0_57, %c0_58], %204 {strides = array<i32>} : memref<16x128xf32, #tpu.memory_space<vmem>>, vector<16x128xf32>,
    return
  }
  func.func @transform_0(%arg0: i32) -> (i32, i32, i32) {
    %c0_i32 = arith.constant 0 : i32
    %c0_i32_0 = arith.constant 0 : i32
    %c0_i32_1 = arith.constant 0 : i32
    return %c0_i32, %arg0, %c0_i32_0 : i32, i32, i32
  }
  func.func @transform_1(%arg0: i32) -> (i32, i32) {
    %c0_i32 = arith.constant 0 : i32
    %c0_i32_0 = arith.constant 0 : i32
    return %arg0, %c0_i32 : i32, i32
  }
  func.func @transform_2(%arg0: i32) -> (i32, i32) {
    %c0_i32 = arith.constant 0 : i32
    %c0_i32_0 = arith.constant 0 : i32
    %c0_i32_1 = arith.constant 0 : i32
    return %c0_i32, %c0_i32_0 : i32, i32
  }
  func.func @transform_3(%arg0: i32) -> (i32, i32) {
    %c0_i32 = arith.constant 0 : i32
    %c0_i32_0 = arith.constant 0 : i32
    %c0_i32_1 = arith.constant 0 : i32
    return %c0_i32, %c0_i32_0 : i32, i32
  }
  func.func @transform_4(%arg0: i32) -> (i32, i32) {
    %c0_i32 = arith.constant 0 : i32
    %c0_i32_0 = arith.constant 0 : i32
    %c0_i32_1 = arith.constant 0 : i32
    return %c0_i32, %c0_i32_0 : i32, i32
  }
  func.func @transform_5(%arg0: i32) -> (i32, i32) {
    %c0_i32 = arith.constant 0 : i32
    %c0_i32_0 = arith.constant 0 : i32
    return %arg0, %c0_i32 : i32, i32
  }
  func.func @transform_6(%arg0: i32) -> (i32, i32) {
    %c0_i32 = arith.constant 0 : i32
    %c0_i32_0 = arith.constant 0 : i32
    return %arg0, %c0_i32 : i32, i32
  }
}

</mosaic_0001>

<llo_original>
// kernel: decoder_rnn_forward.1
$region0: #{decoder_rnn_forward.1}
  #allocation0 [shape = 'u32[]', space=smem, size = 0x4, offset = 0x4, fixed_abs, tag = 'smem constant byte address 0x4 - core index']
  #allocation1 [shape = 'u32[72,128]{1,0:T(1,128)}', space=vmem, size = 0x9000, scoped, tag = 'internal scratch']
  #allocation2 [shape = 'f32[16,32]{1,0:T(8,128)}', space=vmem, size = 0x2000, scoped, tag = 'scratch operand']
  %s0 = inlined_call_operand.vmem [shape: f32[2,2,96], index: 0, kind: input, shape index: {}]
  %s1 = inlined_call_operand.vmem [shape: f32[2,32], index: 1, kind: input, shape index: {}]
  %s2 = inlined_call_operand.vmem [shape: f32[1,32], index: 2, kind: input, shape index: {}]
  %s3 = inlined_call_operand.vmem [shape: f32[32,96], index: 3, kind: input, shape index: {}]
  %s4 = inlined_call_operand.vmem [shape: f32[32,128], index: 4, kind: input, shape index: {}]
  %s5 = inlined_call_operand.vmem [shape: f32[2,128], index: 5, kind: input, shape index: {}]
  %s6 = inlined_call_operand.hbm [shape: f32[16,128], index: 6, kind: output, shape index: {}]
  %s7 = sld [smem:[#allocation0]]
  $region34: #{decoder_rnn_forward.1} parent=0
    _
  %s9 = ssub.s32 1, %s7
  %s10 = scalar_select 0, %s9, %s7
  $region1: #{decoder_rnn_forward.1} parent=0
    #allocation3 [shape = 'u8[8192]{0}', space=vmem, size = 0x2000, scoped, tag = 'output window, operand 0, single buffered']
    #allocation4 [shape = 's32[1]{0}', space=sflag, size = 0x4, scoped, tag = 'scoped memory for decoder_rnn_forward.1']
    %11 = vsyncpa [#allocation4], 0
    // Predicated region
    $region2: #{decoder_rnn_forward.1} parent=1 // pred_check
      _
    $region3: #{decoder_rnn_forward.1} parent=1 // pred_check_branch
      %13 = sbr.rel (0) target = $region5
    $region4: #{decoder_rnn_forward.1} parent=1 // pred_region
      _
    $region5: #{decoder_rnn_forward.1} parent=1 // pred_fallthru
      _
    // Predicated region
    $region6: #{decoder_rnn_forward.1} parent=1 // pred_check
      _
    $region7: #{decoder_rnn_forward.1} parent=1 // pred_check_branch
      %15 = sbr.rel (0) target = $region9
    $region8: #{decoder_rnn_forward.1} parent=1 // pred_region
      _
    $region9: #{decoder_rnn_forward.1} parent=1 // pred_fallthru
      _
    // Predicated region
    $region10: #{decoder_rnn_forward.1} parent=1 // pred_check
      _
    $region11: #{decoder_rnn_forward.1} parent=1 // pred_check_branch
      %17 = sbr.rel (0) target = $region13
    $region12: #{decoder_rnn_forward.1} parent=1 // pred_region
      _
    $region13: #{decoder_rnn_forward.1} parent=1 // pred_fallthru
      _
    // Predicated region
    $region14: #{decoder_rnn_forward.1} parent=1 // pred_check
      _
    $region15: #{decoder_rnn_forward.1} parent=1 // pred_check_branch
      %19 = sbr.rel (0) target = $region17
    $region16: #{decoder_rnn_forward.1} parent=1 // pred_region
      _
    $region17: #{decoder_rnn_forward.1} parent=1 // pred_fallthru
      _
    // Predicated region
    $region18: #{decoder_rnn_forward.1} parent=1 // pred_check
      _
    $region19: #{decoder_rnn_forward.1} parent=1 // pred_check_branch
      %21 = sbr.rel (0) target = $region21
    $region20: #{decoder_rnn_forward.1} parent=1 // pred_region
      _
    $region21: #{decoder_rnn_forward.1} parent=1 // pred_fallthru
      _
    // Predicated region
    $region22: #{decoder_rnn_forward.1} parent=1 // pred_check
      _
    $region23: #{decoder_rnn_forward.1} parent=1 // pred_check_branch
      %23 = sbr.rel (0) target = $region25
    $region24: #{decoder_rnn_forward.1} parent=1 // pred_region
      _
    $region25: #{decoder_rnn_forward.1} parent=1 // pred_fallthru
      _
    %v24 = vld [vmem:[%s3] sm:$0xff]
    %v25 = vld [vmem:[%s3 + $0x8] sm:$0xff]
    %v26 = vld [vmem:[%s3 + $0x10] sm:$0xff]
    %v27 = vld [vmem:[%s3 + $0x18] sm:$0xff]
    %v28 = vld [vmem:[%s2] sm:$0x1]
    %v29 = vld [vmem:[%s0] sm:$0x3]
    %s30 = scalar_lea.vmem %s0, 2
    %v31 = vld [vmem:[%s30] sm:$0x3]
    %v32 = vld [vmem:[%s1] sm:$0x3]
    %vm33 = vcmask 261120
    %v35 = vsel %vm33, %v32, 0
    %37 = vmatpush.msra.mxu0 0.0
    %38 = vmatpush.msra.mxu0 0.0
    %39 = vmatpush.msra.mxu0 0.0
    %40 = vmatpush.msra.mxu0 0.0
    %41 = vmatpush.msra.mxu0 0.0
    %42 = vmatpush.msra.mxu0 0.0
    %43 = vmatpush.msra.mxu0 0.0
    %44 = vmatpush.msra.mxu0 0.0
    %45 = vmatpush.msra.mxu0 0.0
    %46 = vmatpush.msra.mxu0 0.0
    %47 = vmatpush.msra.mxu0 0.0
    %48 = vmatpush.msra.mxu0 0.0
    %49 = vmatpush.msra.mxu0 %v27
    %50 = vmatpush.msra.mxu0 %v26
    %51 = vmatpush.msra.mxu0 %v25
    %52 = vmatpush.msra.mxu0 %v24
    %53 = vmatmul.f32.gmra.mxu0 %v35
    %v54 = vpop.f32.mrf.mxu0
    %v55 = vadd.f32 0.0, %v54
    %56 = vdwg.mxu0
    %v57 = vadd.f32 %v29, %v55
    %v58 = vmul.f32 %v57, 0.5
    %v59 = vtanh.pop %v58
    %v60 = vmul.f32 %v59, 0.5
    %v61 = vadd.f32 %v60, 0.5
    %v63 = vperm.slane %v28, 0
    %64 = vrot.lane.b32.xlu0 %v63, 64
    %v65 = vpop.permute.xlu0 %64
    %v67 = vadd.f32 %v55, %v65
    %69 = vrot.lane.b32.xlu0 %v67, 64
    %v70 = vpop.permute.xlu0 %69
    %v72 = vmul.f32 %v61, %v70
    %74 = vrot.lane.b32.xlu0 %v72, 64
    %v75 = vpop.permute.xlu0 %74
    %v77 = vadd.f32 %v29, %v75
    %v78 = vtanh.pop %v77
    %80 = vrot.lane.b32.xlu0 %v78, 64
    %v81 = vpop.permute.xlu0 %80
    %v83 = vsub.f32 %v32, %v81
    %85 = vrot.lane.b32.xlu0 %v83, 32
    %v86 = vpop.permute.xlu0 %85
    %v88 = vmul.f32 %v61, %v86
    %90 = vrot.lane.b32.xlu0 %v88, 32
    %v91 = vpop.permute.xlu0 %90
    %v93 = vadd.f32 %v78, %v91
    %95 = vrot.lane.b32.xlu0 %v93, 64
    %v96 = vpop.permute.xlu0 %95
    %vm98 = vcmask 254976
    %99 = vst.msk [vmem:[#allocation2] sm:$0x3] %vm98, %v96
    %v100 = vsel %vm33, %v96, 0
    %102 = vmatpush.msra.mxu0 0.0
    %103 = vmatpush.msra.mxu0 0.0
    %104 = vmatpush.msra.mxu0 0.0
    %105 = vmatpush.msra.mxu0 0.0
    %106 = vmatpush.msra.mxu0 0.0
    %107 = vmatpush.msra.mxu0 0.0
    %108 = vmatpush.msra.mxu0 0.0
    %109 = vmatpush.msra.mxu0 0.0
    %110 = vmatpush.msra.mxu0 0.0
    %111 = vmatpush.msra.mxu0 0.0
    %112 = vmatpush.msra.mxu0 0.0
    %113 = vmatpush.msra.mxu0 0.0
    %114 = vmatpush.msra.mxu0 %v27
    %115 = vmatpush.msra.mxu0 %v26
    %116 = vmatpush.msra.mxu0 %v25
    %117 = vmatpush.msra.mxu0 %v24
    %118 = vmatmul.f32.gmra.mxu0 %v100
    %v119 = vpop.f32.mrf.mxu0
    %v120 = vadd.f32 0.0, %v119
    %121 = vdwg.mxu0
    %v122 = vadd.f32 %v31, %v120
    %v123 = vmul.f32 %v122, 0.5
    %v124 = vtanh.pop %v123
    %v125 = vmul.f32 %v124, 0.5
    %v126 = vadd.f32 %v125, 0.5
    %v127 = vadd.f32 %v120, %v65
    %129 = vrot.lane.b32.xlu0 %v127, 64
    %v130 = vpop.permute.xlu0 %129
    %v132 = vmul.f32 %v126, %v130
    %134 = vrot.lane.b32.xlu0 %v132, 64
    %v135 = vpop.permute.xlu0 %134
    %v137 = vadd.f32 %v31, %v135
    %v138 = vtanh.pop %v137
    %v139 = vsub.f32 %v93, %v138
    %141 = vrot.lane.b32.xlu0 %v139, 96
    %v142 = vpop.permute.xlu0 %141
    %v144 = vmul.f32 %v126, %v142
    %146 = vrot.lane.b32.xlu0 %v144, 32
    %v147 = vpop.permute.xlu0 %146
    %v149 = vadd.f32 %v138, %v147
    %151 = vrot.lane.b32.xlu0 %v149, 64
    %v152 = vpop.permute.xlu0 %151
    %154 = vst.msk [vmem:[#allocation2 + $0x2] sm:$0x3] %vm98, %v152
    %v155 = vsel %vm33, %v152, 0
    %157 = vmatpush.msra.mxu0 0.0
    %158 = vmatpush.msra.mxu0 0.0
    %159 = vmatpush.msra.mxu0 0.0
    %160 = vmatpush.msra.mxu0 0.0
    %161 = vmatpush.msra.mxu0 0.0
    %162 = vmatpush.msra.mxu0 0.0
    %163 = vmatpush.msra.mxu0 0.0
    %164 = vmatpush.msra.mxu0 0.0
    %165 = vmatpush.msra.mxu0 0.0
    %166 = vmatpush.msra.mxu0 0.0
    %167 = vmatpush.msra.mxu0 0.0
    %168 = vmatpush.msra.mxu0 0.0
    %169 = vmatpush.msra.mxu0 %v27
    %170 = vmatpush.msra.mxu0 %v26
    %171 = vmatpush.msra.mxu0 %v25
    %172 = vmatpush.msra.mxu0 %v24
    %173 = vmatmul.f32.gmra.mxu0 %v155
    %v174 = vpop.f32.mrf.mxu0
    %v175 = vadd.f32 0.0, %v174
    %176 = vdwg.mxu0
    %v177 = vadd.f32 %v31, %v175
    %v178 = vmul.f32 %v177, 0.5
    %v179 = vtanh.pop %v178
    %v180 = vmul.f32 %v179, 0.5
    %v181 = vadd.f32 %v180, 0.5
    %v182 = vadd.f32 %v175, %v65
    %184 = vrot.lane.b32.xlu0 %v182, 64
    %v185 = vpop.permute.xlu0 %184
    %v187 = vmul.f32 %v181, %v185
    %189 = vrot.lane.b32.xlu0 %v187, 64
    %v190 = vpop.permute.xlu0 %189
    %v192 = vadd.f32 %v31, %v190
    %v193 = vtanh.pop %v192
    %v194 = vsub.f32 %v149, %v193
    %196 = vrot.lane.b32.xlu0 %v194, 96
    %v197 = vpop.permute.xlu0 %196
    %v199 = vmul.f32 %v181, %v197
    %201 = vrot.lane.b32.xlu0 %v199, 32
    %v202 = vpop.permute.xlu0 %201
    %v204 = vadd.f32 %v193, %v202
    %206 = vrot.lane.b32.xlu0 %v204, 64
    %v207 = vpop.permute.xlu0 %206
    %209 = vst.msk [vmem:[#allocation2 + $0x4] sm:$0x3] %vm98, %v207
    %v210 = vsel %vm33, %v207, 0
    %212 = vmatpush.msra.mxu0 0.0
    %213 = vmatpush.msra.mxu0 0.0
    %214 = vmatpush.msra.mxu0 0.0
    %215 = vmatpush.msra.mxu0 0.0
    %216 = vmatpush.msra.mxu0 0.0
    %217 = vmatpush.msra.mxu0 0.0
    %218 = vmatpush.msra.mxu0 0.0
    %219 = vmatpush.msra.mxu0 0.0
    %220 = vmatpush.msra.mxu0 0.0
    %221 = vmatpush.msra.mxu0 0.0
    %222 = vmatpush.msra.mxu0 0.0
    %223 = vmatpush.msra.mxu0 0.0
    %224 = vmatpush.msra.mxu0 %v27
    %225 = vmatpush.msra.mxu0 %v26
    %226 = vmatpush.msra.mxu0 %v25
    %227 = vmatpush.msra.mxu0 %v24
    %228 = vmatmul.f32.gmra.mxu0 %v210
    %v229 = vpop.f32.mrf.mxu0
    %v230 = vadd.f32 0.0, %v229
    %231 = vdwg.mxu0
    %v232 = vadd.f32 %v31, %v230
    %v233 = vmul.f32 %v232, 0.5
    %v234 = vtanh.pop %v233
    %v235 = vmul.f32 %v234, 0.5
    %v236 = vadd.f32 %v235, 0.5
    %v237 = vadd.f32 %v230, %v65
    %239 = vrot.lane.b32.xlu0 %v237, 64
    %v240 = vpop.permute.xlu0 %239
    %v242 = vmul.f32 %v236, %v240
    %244 = vrot.lane.b32.xlu0 %v242, 64
    %v245 = vpop.permute.xlu0 %244
    %v247 = vadd.f32 %v31, %v245
    %v248 = vtanh.pop %v247
    %v249 = vsub.f32 %v204, %v248
    %251 = vrot.lane.b32.xlu0 %v249, 96
    %v252 = vpop.permute.xlu0 %251
    %v254 = vmul.f32 %v236, %v252
    %256 = vrot.lane.b32.xlu0 %v254, 32
    %v257 = vpop.permute.xlu0 %256
    %v259 = vadd.f32 %v248, %v257
    %261 = vrot.lane.b32.xlu0 %v259, 64
    %v262 = vpop.permute.xlu0 %261
    %264 = vst.msk [vmem:[#allocation2 + $0x6] sm:$0x3] %vm98, %v262
    %v265 = vsel %vm33, %v262, 0
    %267 = vmatpush.msra.mxu0 0.0
    %268 = vmatpush.msra.mxu0 0.0
    %269 = vmatpush.msra.mxu0 0.0
    %270 = vmatpush.msra.mxu0 0.0
    %271 = vmatpush.msra.mxu0 0.0
    %272 = vmatpush.msra.mxu0 0.0
    %273 = vmatpush.msra.mxu0 0.0
    %274 = vmatpush.msra.mxu0 0.0
    %275 = vmatpush.msra.mxu0 0.0
    %276 = vmatpush.msra.mxu0 0.0
    %277 = vmatpush.msra.mxu0 0.0
    %278 = vmatpush.msra.mxu0 0.0
    %279 = vmatpush.msra.mxu0 %v27
    %280 = vmatpush.msra.mxu0 %v26
    %281 = vmatpush.msra.mxu0 %v25
    %282 = vmatpush.msra.mxu0 %v24
    %283 = vmatmul.f32.gmra.mxu0 %v265
    %v284 = vpop.f32.mrf.mxu0
    %v285 = vadd.f32 0.0, %v284
    %286 = vdwg.mxu0
    %v287 = vadd.f32 %v31, %v285
    %v288 = vmul.f32 %v287, 0.5
    %v289 = vtanh.pop %v288
    %v290 = vmul.f32 %v289, 0.5
    %v291 = vadd.f32 %v290, 0.5
    %v292 = vadd.f32 %v285, %v65
    %294 = vrot.lane.b32.xlu0 %v292, 64
    %v295 = vpop.permute.xlu0 %294
    %v297 = vmul.f32 %v291, %v295
    %299 = vrot.lane.b32.xlu0 %v297, 64
    %v300 = vpop.permute.xlu0 %299
    %v302 = vadd.f32 %v31, %v300
    %v303 = vtanh.pop %v302
    %v304 = vsub.f32 %v259, %v303
    %306 = vrot.lane.b32.xlu0 %v304, 96
    %v307 = vpop.permute.xlu0 %306
    %v309 = vmul.f32 %v291, %v307
    %311 = vrot.lane.b32.xlu0 %v309, 32
    %v312 = vpop.permute.xlu0 %311
    %v314 = vadd.f32 %v303, %v312
    %316 = vrot.lane.b32.xlu0 %v314, 64
    %v317 = vpop.permute.xlu0 %316
    %319 = vst.msk [vmem:[#allocation2 + $0x8] sm:$0x3] %vm98, %v317
    %v320 = vsel %vm33, %v317, 0
    %322 = vmatpush.msra.mxu0 0.0
    %323 = vmatpush.msra.mxu0 0.0
    %324 = vmatpush.msra.mxu0 0.0
    %325 = vmatpush.msra.mxu0 0.0
    %326 = vmatpush.msra.mxu0 0.0
    %327 = vmatpush.msra.mxu0 0.0
    %328 = vmatpush.msra.mxu0 0.0
    %329 = vmatpush.msra.mxu0 0.0
    %330 = vmatpush.msra.mxu0 0.0
    %331 = vmatpush.msra.mxu0 0.0
    %332 = vmatpush.msra.mxu0 0.0
    %333 = vmatpush.msra.mxu0 0.0
    %334 = vmatpush.msra.mxu0 %v27
    %335 = vmatpush.msra.mxu0 %v26
    %336 = vmatpush.msra.mxu0 %v25
    %337 = vmatpush.msra.mxu0 %v24
    %338 = vmatmul.f32.gmra.mxu0 %v320
    %v339 = vpop.f32.mrf.mxu0
    %v340 = vadd.f32 0.0, %v339
    %341 = vdwg.mxu0
    %v342 = vadd.f32 %v31, %v340
    %v343 = vmul.f32 %v342, 0.5
    %v344 = vtanh.pop %v343
    %v345 = vmul.f32 %v344, 0.5
    %v346 = vadd.f32 %v345, 0.5
    %v347 = vadd.f32 %v340, %v65
    %349 = vrot.lane.b32.xlu0 %v347, 64
    %v350 = vpop.permute.xlu0 %349
    %v352 = vmul.f32 %v346, %v350
    %354 = vrot.lane.b32.xlu0 %v352, 64
    %v355 = vpop.permute.xlu0 %354
    %v357 = vadd.f32 %v31, %v355
    %v358 = vtanh.pop %v357
    %v359 = vsub.f32 %v314, %v358
    %361 = vrot.lane.b32.xlu0 %v359, 96
    %v362 = vpop.permute.xlu0 %361
    %v364 = vmul.f32 %v346, %v362
    %366 = vrot.lane.b32.xlu0 %v364, 32
    %v367 = vpop.permute.xlu0 %366
    %v369 = vadd.f32 %v358, %v367
    %371 = vrot.lane.b32.xlu0 %v369, 64
    %v372 = vpop.permute.xlu0 %371
    %374 = vst.msk [vmem:[#allocation2 + $0xa] sm:$0x3] %vm98, %v372
    %v375 = vsel %vm33, %v372, 0
    %377 = vmatpush.msra.mxu0 0.0
    %378 = vmatpush.msra.mxu0 0.0
    %379 = vmatpush.msra.mxu0 0.0
    %380 = vmatpush.msra.mxu0 0.0
    %381 = vmatpush.msra.mxu0 0.0
    %382 = vmatpush.msra.mxu0 0.0
    %383 = vmatpush.msra.mxu0 0.0
    %384 = vmatpush.msra.mxu0 0.0
    %385 = vmatpush.msra.mxu0 0.0
    %386 = vmatpush.msra.mxu0 0.0
    %387 = vmatpush.msra.mxu0 0.0
    %388 = vmatpush.msra.mxu0 0.0
    %389 = vmatpush.msra.mxu0 %v27
    %390 = vmatpush.msra.mxu0 %v26
    %391 = vmatpush.msra.mxu0 %v25
    %392 = vmatpush.msra.mxu0 %v24
    %393 = vmatmul.f32.gmra.mxu0 %v375
    %v394 = vpop.f32.mrf.mxu0
    %v395 = vadd.f32 0.0, %v394
    %396 = vdwg.mxu0
    %v397 = vadd.f32 %v31, %v395
    %v398 = vmul.f32 %v397, 0.5
    %v399 = vtanh.pop %v398
    %v400 = vmul.f32 %v399, 0.5
    %v401 = vadd.f32 %v400, 0.5
    %v402 = vadd.f32 %v395, %v65
    %404 = vrot.lane.b32.xlu0 %v402, 64
    %v405 = vpop.permute.xlu0 %404
    %v407 = vmul.f32 %v401, %v405
    %409 = vrot.lane.b32.xlu0 %v407, 64
    %v410 = vpop.permute.xlu0 %409
    %v412 = vadd.f32 %v31, %v410
    %v413 = vtanh.pop %v412
    %v414 = vsub.f32 %v369, %v413
    %416 = vrot.lane.b32.xlu0 %v414, 96
    %v417 = vpop.permute.xlu0 %416
    %v419 = vmul.f32 %v401, %v417
    %421 = vrot.lane.b32.xlu0 %v419, 32
    %v422 = vpop.permute.xlu0 %421
    %v424 = vadd.f32 %v413, %v422
    %426 = vrot.lane.b32.xlu0 %v424, 64
    %v427 = vpop.permute.xlu0 %426
    %429 = vst.msk [vmem:[#allocation2 + $0xc] sm:$0x3] %vm98, %v427
    %v430 = vsel %vm33, %v427, 0
    %432 = vmatpush.msra.mxu0 0.0
    %433 = vmatpush.msra.mxu0 0.0
    %434 = vmatpush.msra.mxu0 0.0
    %435 = vmatpush.msra.mxu0 0.0
    %436 = vmatpush.msra.mxu0 0.0
    %437 = vmatpush.msra.mxu0 0.0
    %438 = vmatpush.msra.mxu0 0.0
    %439 = vmatpush.msra.mxu0 0.0
    %440 = vmatpush.msra.mxu0 0.0
    %441 = vmatpush.msra.mxu0 0.0
    %442 = vmatpush.msra.mxu0 0.0
    %443 = vmatpush.msra.mxu0 0.0
    %444 = vmatpush.msra.mxu0 %v27
    %445 = vmatpush.msra.mxu0 %v26
    %446 = vmatpush.msra.mxu0 %v25
    %447 = vmatpush.msra.mxu0 %v24
    %448 = vmatmul.f32.gmra.mxu0 %v430
    %v449 = vpop.f32.mrf.mxu0
    %v450 = vadd.f32 0.0, %v449
    %451 = vdwg.mxu0
    %v452 = vadd.f32 %v31, %v450
    %v453 = vmul.f32 %v452, 0.5
    %v454 = vtanh.pop %v453
    %v455 = vmul.f32 %v454, 0.5
    %v456 = vadd.f32 %v455, 0.5
    %v457 = vadd.f32 %v450, %v65
    %459 = vrot.lane.b32.xlu0 %v457, 64
    %v460 = vpop.permute.xlu0 %459
    %v462 = vmul.f32 %v456, %v460
    %464 = vrot.lane.b32.xlu0 %v462, 64
    %v465 = vpop.permute.xlu0 %464
    %v467 = vadd.f32 %v31, %v465
    %v468 = vtanh.pop %v467
    %v469 = vsub.f32 %v424, %v468
    %471 = vrot.lane.b32.xlu0 %v469, 96
    %v472 = vpop.permute.xlu0 %471
    %v474 = vmul.f32 %v456, %v472
    %476 = vrot.lane.b32.xlu0 %v474, 32
    %v477 = vpop.permute.xlu0 %476
    %v479 = vadd.f32 %v468, %v477
    %481 = vrot.lane.b32.xlu0 %v479, 64
    %v482 = vpop.permute.xlu0 %481
    %484 = vst.msk [vmem:[#allocation2 + $0xe] sm:$0x3] %vm98, %v482
    %v485 = vld [vmem:[%s5] sm:$0x3]
    %v487 = vrot.slane %v485, 6
    %v489 = vrot.slane %v485, 4
    %v491 = vrot.slane %v485, 2
    %vm493 = vcmask 1041408
    %v494 = vsel %vm493, %v485, %v487
    %vm495 = vcmask 1043456
    %v496 = vsel %vm495, %v494, %v489
    %vm497 = vcmask 1045504
    %v498 = vsel %vm497, %v496, %v491
    %v499 = vld [vmem:[#allocation2] sm:$0xff]
    %v500 = vld [vmem:[#allocation2 + $0x8] sm:$0xff]
    %v501 = vld [vmem:[%s4] sm:$0xff]
    %v502 = vld [vmem:[%s4 + $0x8] sm:$0xff]
    %v503 = vld [vmem:[%s4 + $0x10] sm:$0xff]
    %v504 = vld [vmem:[%s4 + $0x18] sm:$0xff]
    %v506 = vsel %vm33, %v499, 0
    %v509 = vsel %vm33, %v500, 0
    %511 = vmatpush.msra.mxu0 0.0
    %512 = vmatpush.msra.mxu0 0.0
    %513 = vmatpush.msra.mxu0 0.0
    %514 = vmatpush.msra.mxu0 0.0
    %515 = vmatpush.msra.mxu0 0.0
    %516 = vmatpush.msra.mxu0 0.0
    %517 = vmatpush.msra.mxu0 0.0
    %518 = vmatpush.msra.mxu0 0.0
    %519 = vmatpush.msra.mxu0 0.0
    %520 = vmatpush.msra.mxu0 0.0
    %521 = vmatpush.msra.mxu0 0.0
    %522 = vmatpush.msra.mxu0 0.0
    %523 = vmatpush.msra.mxu0 %v504
    %524 = vmatpush.msra.mxu0 %v503
    %525 = vmatpush.msra.mxu0 %v502
    %526 = vmatpush.msra.mxu0 %v501
    %527 = vmatmul.f32.gmra.mxu0 %v506
    %v528 = vpop.f32.mrf.mxu0
    %v529 = vadd.f32 %v498, %v528
    %530 = vmatmul.f32.gmra.mxu0 %v509
    %v531 = vpop.f32.mrf.mxu0
    %v532 = vadd.f32 %v498, %v531
    %533 = vdwg.mxu0
    %534 = vst [vmem:[#allocation3] sm:$0xff] %v529
    %535 = vst [vmem:[#allocation3 + $0x8] sm:$0xff] %v532
    // Predicated region
    $region26: #{decoder_rnn_forward.1} parent=1 // pred_check
      _
    $region27: #{decoder_rnn_forward.1} parent=1 // pred_check_branch
      %537 = sbr.rel (0) target = $region29
    $region28: #{decoder_rnn_forward.1} parent=1 // pred_region
      %539 = vsyncadd [#allocation4], 0
      %s540 = sshll.u32 [#allocation3], 4
      %s541 = int_to_ptr.vmem [resolvable:$true] %s540
      %s542 = sshll.u32 %s6, 4
      %s543 = int_to_ptr.hbm [resolvable:$true] %s542
      %548 = dma.vmem_to_hbm [thread:$0]  %s541, 256, %s543, [#allocation4], 128, 128, 8
    $region29: #{decoder_rnn_forward.1} parent=1 // pred_fallthru
      _
    // Predicated region
    $region30: #{decoder_rnn_forward.1} parent=1 // pred_check
      _
    $region31: #{decoder_rnn_forward.1} parent=1 // pred_check_branch
      %550 = sbr.rel (0) target = $region33
    $region32: #{decoder_rnn_forward.1} parent=1 // pred_region
      %552 = dma.done [#allocation4], 256
    $region33: #{decoder_rnn_forward.1} parent=1 // pred_fallthru
      _
    %553 = vsyncpa [#allocation4], 1

</llo_original>
